<compile_context>
chip_gen: v5e
topology: v5e:2x2
jax: 0.10.0
libtpu: 0.0.40
codegen_flags: <defaults>
</compile_context>

<pallas_src>
import math

import jax
import jax.numpy as jnp
import numpy as np
from jax import lax
from jax.experimental import pallas as pl
from jax.experimental.pallas import tpu as pltpu


def _round_up(a, b):
    return ((a + b - 1) // b) * b


# ---------------------------------------------------------------------------
# Kernel 1 (gridless, tiny): diffuser trunk -> h2 (B_pad, H)
# ---------------------------------------------------------------------------
def tenc_h2_kernel(
    x_ref,      # (B_pad, Vp_pad)  f32  normalized-input logits (lane/row padded)
    enc_ref,    # (B_pad, S, H)    f32  SASRec sequence encodings
    idx_ref,    # (B_pad, 1)       i32  random_indice (target position in seq)
    tail_ref,   # (B_pad, K_tail)  f32  [timestep embedding | zeros]
    w1w_ref,    # (Vp_pad, H)      bf16 self.w1 weight (transposed, row-padded)
    w1b_ref,    # (1, H)           f32  self.w1 bias
    d1w_ref,    # (K_pad, 2H)      bf16 diffuser[0] weight (transposed, row-padded)
    d1b_ref,    # (1, 2H)          f32  diffuser[0] bias
    d2w_ref,    # (2H, H)          bf16 diffuser[2] weight (transposed)
    d2b_ref,    # (1, H)           f32  diffuser[2] bias
    h2_ref,     # (B_pad, H)       f32  output: diffuser result (pre diff_out)
):
    B, S, H = enc_ref.shape

    # ---- F.normalize(x, dim=1) with a size-1 dim -> x / max(|x|, eps) -------
    # (padded lanes/rows are 0 and stay 0)
    x = x_ref[...]
    xn = (x / jnp.maximum(jnp.abs(x), 1e-12)).astype(jnp.bfloat16)

    # ---- x = self.w1(x): single lane-dense MXU op ----------------------------
    xw = jnp.dot(xn, w1w_ref[...], preferred_element_type=jnp.float32) + w1b_ref[...]

    # ---- sequence statistics --------------------------------------------------
    enc = enc_ref[...]
    glob = jnp.mean(enc, axis=1)                                     # (B, H)

    # target_encoding = inputs_encoding[arange(B), random_indice, :]
    s_iota = lax.broadcasted_iota(jnp.int32, (B, S), 1)
    onehot = (s_iota == idx_ref[...]).astype(jnp.float32)            # (B, S)
    target = jnp.sum(enc * onehot[:, :, None], axis=1)               # (B, H)

    # ---- pack [xw | glob | target | temb | 0] in-register (no VMEM scratch) --
    # tail_ref carries the timestep embedding followed by explicit zeros, so
    # the padded K rows of d1_w always multiply against zeros (NaN-safe).
    feat = jnp.concatenate([xw, glob, target, tail_ref[...]],
                           axis=-1).astype(jnp.bfloat16)             # (B, K_pad)

    # ---- diffuser: Linear -> Tanh -> Linear -----------------------------------
    h1 = jnp.tanh(jnp.dot(feat, d1w_ref[...],
                          preferred_element_type=jnp.float32) + d1b_ref[...])
    h2 = jnp.dot(h1.astype(jnp.bfloat16), d2w_ref[...],
                 preferred_element_type=jnp.float32) + d2b_ref[...]
    h2_ref[...] = h2


# ---------------------------------------------------------------------------
# Kernel 2 (1-D grid over the vocab dimension): diff_out Linear
# ---------------------------------------------------------------------------
def tenc_out_kernel(
    h2_ref,     # (B_pad, H)        f32  same block every grid step
    ow_ref,     # (H, n_block)      bf16 diff_out weight block
    ob_ref,     # (1, n_block)      f32  diff_out bias block
    out_ref,    # (B_pad, n_block)  f32  logits block
):
    h2 = h2_ref[...].astype(jnp.bfloat16)
    out_ref[...] = (jnp.dot(h2, ow_ref[...], preferred_element_type=jnp.float32)
                    + ob_ref[...])


# ---------------------------------------------------------------------------
# One-time weight preparation (hoisted out of the per-call path)
# ---------------------------------------------------------------------------
def prepare_tenc_params(params, *, n_block_max=2048):
    """Pads / casts weights once; the returned dict is reused across calls.

    n_block_max: max lanes per vocab block (multiple of 256 for v6e/v7x MXU).
    Re-derive per generation: larger (8k-16k) on v6e's 128 MiB VMEM, roughly
    halved on v7x's 64 MiB, and sized so the double-buffered blocks stay under
    the ~16 MiB default scoped VMEM on v5e."""
    f32, bf16 = jnp.float32, jnp.bfloat16
    w1_w = jnp.asarray(params["w1_w"], f32)
    Vp, H = w1_w.shape
    T = params["d1_w"].shape[0] - 3 * H
    K_in = 3 * H + T
    K_pad = _round_up(K_in, 128)                  # packed diffuser-input width
    vp128 = _round_up(Vp, 128)
    n_block = min(n_block_max, vp128)
    Vp_pad = _round_up(vp128, n_block)            # lane-dense vocab dimension

    return dict(
        Vp=Vp, H=H, T=T, K_pad=K_pad, Vp_pad=Vp_pad, n_block=n_block,
        w1_w=jnp.pad(w1_w, ((0, Vp_pad - Vp), (0, 0))).astype(bf16),
        w1_b=jnp.asarray(params["w1_b"], f32).reshape(1, H),
        d1_w=jnp.pad(jnp.asarray(params["d1_w"], f32),
                     ((0, K_pad - K_in), (0, 0))).astype(bf16),
        d1_b=jnp.asarray(params["d1_b"], f32).reshape(1, 2 * H),
        d2_w=jnp.asarray(params["d2_w"], f32).astype(bf16),
        d2_b=jnp.asarray(params["d2_b"], f32).reshape(1, H),
        out_w=jnp.pad(jnp.asarray(params["out_w"], f32),
                      ((0, 0), (0, Vp_pad - Vp))).astype(bf16),
        out_b=jnp.pad(jnp.asarray(params["out_b"], f32).reshape(1, Vp),
                      ((0, 0), (0, Vp_pad - Vp))),
    )


# ---------------------------------------------------------------------------
# Forward wrapper (mirrors Tenc.forward, mlp2 branch, dropout = identity)
# ---------------------------------------------------------------------------
def tenc_forward(prepped, x, seqs_logits, inputs_encoding, step, random_indice):
    """Returns (predicted_x, seqs_logits, diff_logits, inputs_encoding)."""
    f32 = jnp.float32
    B, L, Vp = x.shape
    assert L == 1, "Tenc.forward assumes L == 1 (single target item)"
    assert Vp == prepped["Vp"]
    H, T = prepped["H"], prepped["T"]
    K_pad, Vp_pad, n_block = prepped["K_pad"], prepped["Vp_pad"], prepped["n_block"]
    S = inputs_encoding.shape[1]
    B_pad = _round_up(B, 8)                       # f32 sublane count
    K_tail = K_pad - 3 * H

    # --- per-call activation plumbing only (weights already padded/cast) -----
    x2 = jnp.zeros((B_pad, Vp_pad), f32).at[:B, :Vp].set(
        x.reshape(B, Vp).astype(f32))
    enc = jnp.zeros((B_pad, S, H), f32).at[:B].set(inputs_encoding.astype(f32))
    idx = jnp.zeros((B_pad, 1), jnp.int32).at[:B, 0].set(
        random_indice.astype(jnp.int32).reshape(B))

    # sinusoidal timestep embedding, computed host-side (drops in-kernel
    # exp/cos/sin and the per-row scalar broadcast loop)
    half = T // 2
    freqs = jnp.exp(-math.log(10000.0) * jnp.arange(half, dtype=f32) / half)
    ang = step.astype(f32).reshape(B, 1) * freqs[None]
    temb = jnp.concatenate([jnp.cos(ang), jnp.sin(ang)], axis=-1)     # (B, 2*half)
    tail = jnp.zeros((B_pad, K_tail), f32).at[:B, :2 * half].set(temb)

    vmem = pl.BlockSpec(memory_space=pltpu.MemorySpace.VMEM)

    # ---- kernel 1: trunk -> h2 ------------------------------------------------
    h2 = pl.pallas_call(
        tenc_h2_kernel,
        out_shape=jax.ShapeDtypeStruct((B_pad, H), f32),
        in_specs=[vmem] * 10,
        out_specs=vmem,
    )(x2, enc, idx, tail,
      prepped["w1_w"], prepped["w1_b"], prepped["d1_w"], prepped["d1_b"],
      prepped["d2_w"], prepped["d2_b"])

    # ---- kernel 2: diff_out, gridded over the vocab (N) dimension -------------
    logits_pad = pl.pallas_call(
        tenc_out_kernel,
        out_shape=jax.ShapeDtypeStruct((B_pad, Vp_pad), f32),
        grid=(Vp_pad // n_block,),
        in_specs=[
            pl.BlockSpec((B_pad, H), lambda j: (0, 0)),
            pl.BlockSpec((H, n_block), lambda j: (0, j)),
            pl.BlockSpec((1, n_block), lambda j: (0, j)),
        ],
        out_specs=pl.BlockSpec((B_pad, n_block), lambda j: (0, j)),
        compiler_params=pltpu.CompilerParams(
            dimension_semantics=("parallel",),
            vmem_limit_bytes=32 * 1024 * 1024),
    )(h2, prepped["out_w"], prepped["out_b"])

    diff_logits = logits_pad[:B, :Vp]
    predicted_x = diff_logits[:, None, :]
    return predicted_x, seqs_logits, diff_logits, inputs_encoding


def ref_forward(params, x, inputs_encoding, step, random_indice, T):
    """Pure-JAX (f32, unfused) reference of the same math (sanity check)."""
    B, L, Vp = x.shape
    xn = x / jnp.maximum(jnp.abs(x), 1e-12)
    xw = xn.reshape(B, Vp) @ params["w1_w"] + params["w1_b"]
    target = inputs_encoding[jnp.arange(B), random_indice, :]
    glob = inputs_encoding.mean(axis=1)
    half = T // 2
    freqs = jnp.exp(-math.log(10000.0) * jnp.arange(half, dtype=jnp.float32) / half)
    ang = step.astype(jnp.float32)[:, None] * freqs[None]
    temb = jnp.concatenate([jnp.cos(ang), jnp.sin(ang)], axis=-1)
    feat = jnp.concatenate([xw, glob, target, temb], axis=-1)
    h = jnp.tanh(feat @ params["d1_w"] + params["d1_b"])
    res = h @ params["d2_w"] + params["d2_b"]
    return res @ params["out_w"] + params["out_b"]


if __name__ == "__main__":
    # Small shapes consistent with the module:
    #   hidden_size H=32, time_emb_dim T=16, item_num=299 -> V+1=300,
    #   max_len=8 -> encoded sequence length S=9 (incl. global token), batch B=4.
    # n_block_max=128 so the demo exercises a multi-step vocab grid.
    B, S, H, T, Vp = 4, 9, 32, 16, 300

    key = jax.random.PRNGKey(0)
    ks = jax.random.split(key, 16)

    def linear_params(kw, kb, fan_in, fan_out):
        bound = 1.0 / math.sqrt(fan_in)
        w = jax.random.uniform(kw, (fan_in, fan_out), jnp.float32, -bound, bound)
        b = jax.random.uniform(kb, (1, fan_out), jnp.float32, -bound, bound)
        return w, b

    w1_w, w1_b = linear_params(ks[0], ks[1], Vp, H)                # self.w1
    d1_w, d1_b = linear_params(ks[2], ks[3], 3 * H + T, 2 * H)     # diffuser[0]
    d2_w, d2_b = linear_params(ks[4], ks[5], 2 * H, H)             # diffuser[2]
    out_w, out_b = linear_params(ks[6], ks[7], H, Vp)              # diff_out

    params = dict(w1_w=w1_w, w1_b=w1_b, d1_w=d1_w, d1_b=d1_b,
                  d2_w=d2_w, d2_b=d2_b, out_w=out_w, out_b=out_b)

    # One-time weight preparation (would be cached across calls in practice).
    prepped = prepare_tenc_params(params, n_block_max=128)

    # Example inputs
    x = jax.random.normal(ks[8], (B, 1, Vp), jnp.float32)            # simulated target logits
    inputs_encoding = jax.random.normal(ks[9], (B, S, H), jnp.float32)    # SASRec encodings (external)
    seqs_logits = jax.random.normal(ks[10], (B * S, Vp), jnp.float32)     # SASRec logits (external)
    step = jax.random.randint(ks[11], (B,), 0, 100)
    random_indice = jax.random.randint(ks[12], (B,), 0, S)

    predicted_x, seqs_logits_out, diff_logits, enc_out = tenc_forward(
        prepped, x, seqs_logits, inputs_encoding, step, random_indice)
    jax.block_until_ready((predicted_x, seqs_logits_out, diff_logits, enc_out))

    # Sanity check against pure-JAX f32 reference (kernel runs bf16 matmuls
    # with f32 accumulation, hence the slightly looser tolerance).
    ref = ref_forward(params, x, inputs_encoding, step, random_indice, T)
    assert predicted_x.shape == (B, 1, Vp)
    assert diff_logits.shape == (B, Vp)
    np.testing.assert_allclose(np.asarray(diff_logits), np.asarray(ref),
                               rtol=2e-2, atol=2e-2)

    print("KERNEL_OK")
</pallas_src>

<mosaic_0001>
module attributes {stable_mosaic.version = 11 : i64} {
  func.func @tenc_h2_kernel(%arg0: memref<8x384xf32, #tpu.memory_space<vmem>>, %arg1: memref<8x9x32xf32, #tpu.memory_space<vmem>>, %arg2: memref<8x1xi32, #tpu.memory_space<vmem>>, %arg3: memref<8x32xf32, #tpu.memory_space<vmem>>, %arg4: memref<384x32xbf16, #tpu.memory_space<vmem>>, %arg5: memref<1x32xf32, #tpu.memory_space<vmem>>, %arg6: memref<128x64xbf16, #tpu.memory_space<vmem>>, %arg7: memref<1x64xf32, #tpu.memory_space<vmem>>, %arg8: memref<64x32xbf16, #tpu.memory_space<vmem>>, %arg9: memref<1x32xf32, #tpu.memory_space<vmem>>, %arg10: memref<8x32xf32, #tpu.memory_space<vmem>>) attributes {dimension_semantics = [], scalar_prefetch = 0 : i64, scratch_operands = 0 : i64, tpu.core_type = #tpu.core_type<tc>} {
    %c0 = arith.constant 0 : index
    %c0_0 = arith.constant 0 : index
    %0 = vector.load %arg0[%c0, %c0_0] : memref<8x384xf32, #tpu.memory_space<vmem>>, vector<8x384xf32>
    %1 = math.absf %0 : vector<8x384xf32>
    %cst = arith.constant 9.99999996E-13 : f32
    %2 = vector.broadcast %cst : f32 to vector<8x384xf32>
    %3 = arith.maximumf %1, %2 : vector<8x384xf32>
    %4 = arith.divf %0, %3 : vector<8x384xf32>
    %5 = arith.truncf %4 : vector<8x384xf32> to vector<8x384xbf16>
    %c0_1 = arith.constant 0 : index
    %c0_2 = arith.constant 0 : index
    %6 = vector.load %arg4[%c0_1, %c0_2] : memref<384x32xbf16, #tpu.memory_space<vmem>>, vector<384x32xbf16>
    %cst_3 = arith.constant dense<0.000000e+00> : vector<8x32xf32>
    %7 = tpu.matmul %5, %6, %cst_3 {dimension_numbers = #tpu.dot_dimension_numbers<[1], [0], [0], [1], [0, 0, 1, 1], [], []>} : vector<8x384xbf16>, vector<384x32xbf16>, vector<8x32xf32> -> vector<8x32xf32>
    %c0_4 = arith.constant 0 : index
    %c0_5 = arith.constant 0 : index
    %8 = vector.load %arg5[%c0_4, %c0_5] : memref<1x32xf32, #tpu.memory_space<vmem>>, vector<1x32xf32>
    %9 = vector.broadcast %8 : vector<1x32xf32> to vector<8x32xf32>
    %10 = arith.addf %7, %9 : vector<8x32xf32>
    %c0_6 = arith.constant 0 : index
    %c0_7 = arith.constant 0 : index
    %c0_8 = arith.constant 0 : index
    %11 = vector.load %arg1[%c0_6, %c0_7, %c0_8] : memref<8x9x32xf32, #tpu.memory_space<vmem>>, vector<8x9x32xf32>
    %cst_9 = arith.constant dense<0.000000e+00> : vector<8x32xf32>
    %12 = vector.multi_reduction <add>, %11, %cst_9 [1] : vector<8x9x32xf32> to vector<8x32xf32>
    %cst_10 = arith.constant 9.000000e+00 : f32
    %13 = vector.broadcast %cst_10 : f32 to vector<8x32xf32>
    %14 = arith.divf %12, %13 : vector<8x32xf32>
    %15 = tpu.iota {dimensions = array<i32: 1>} : vector<8x9xi32>
    %c0_11 = arith.constant 0 : index
    %c0_12 = arith.constant 0 : index
    %16 = vector.load %arg2[%c0_11, %c0_12] : memref<8x1xi32, #tpu.memory_space<vmem>>, vector<8x1xi32>
    %17 = vector.broadcast %16 : vector<8x1xi32> to vector<8x9xi32>
    %18 = arith.cmpi eq, %15, %17 : vector<8x9xi32>
    %19 = arith.extui %18 : vector<8x9xi1> to vector<8x9xi32>
    %20 = arith.sitofp %19 : vector<8x9xi32> to vector<8x9xf32>
    %21 = vector.shape_cast %20 : vector<8x9xf32> to vector<8x9x1xf32>
    %22 = vector.broadcast %21 : vector<8x9x1xf32> to vector<8x9x32xf32>
    %23 = arith.mulf %11, %22 : vector<8x9x32xf32>
    %cst_13 = arith.constant dense<0.000000e+00> : vector<8x32xf32>
    %24 = vector.multi_reduction <add>, %23, %cst_13 [1] : vector<8x9x32xf32> to vector<8x32xf32>
    %c0_14 = arith.constant 0 : index
    %c0_15 = arith.constant 0 : index
    %25 = vector.load %arg3[%c0_14, %c0_15] : memref<8x32xf32, #tpu.memory_space<vmem>>, vector<8x32xf32>
    %26 = tpu.concatenate %10, %14, %24, %25 in 1 : vector<8x32xf32>, vector<8x32xf32>, vector<8x32xf32>, vector<8x32xf32> -> vector<8x128xf32>
    %27 = arith.truncf %26 : vector<8x128xf32> to vector<8x128xbf16>
    %c0_16 = arith.constant 0 : index
    %c0_17 = arith.constant 0 : index
    %28 = vector.load %arg6[%c0_16, %c0_17] : memref<128x64xbf16, #tpu.memory_space<vmem>>, vector<128x64xbf16>
    %cst_18 = arith.constant dense<0.000000e+00> : vector<8x64xf32>
    %29 = tpu.matmul %27, %28, %cst_18 {dimension_numbers = #tpu.dot_dimension_numbers<[1], [0], [0], [1], [0, 0, 1, 1], [], []>} : vector<8x128xbf16>, vector<128x64xbf16>, vector<8x64xf32> -> vector<8x64xf32>
    %c0_19 = arith.constant 0 : index
    %c0_20 = arith.constant 0 : index
    %30 = vector.load %arg7[%c0_19, %c0_20] : memref<1x64xf32, #tpu.memory_space<vmem>>, vector<1x64xf32>
    %31 = vector.broadcast %30 : vector<1x64xf32> to vector<8x64xf32>
    %32 = arith.addf %29, %31 : vector<8x64xf32>
    %33 = math.tanh %32 : vector<8x64xf32>
    %34 = arith.truncf %33 : vector<8x64xf32> to vector<8x64xbf16>
    %c0_21 = arith.constant 0 : index
    %c0_22 = arith.constant 0 : index
    %35 = vector.load %arg8[%c0_21, %c0_22] : memref<64x32xbf16, #tpu.memory_space<vmem>>, vector<64x32xbf16>
    %cst_23 = arith.constant dense<0.000000e+00> : vector<8x32xf32>
    %36 = tpu.matmul %34, %35, %cst_23 {dimension_numbers = #tpu.dot_dimension_numbers<[1], [0], [0], [1], [0, 0, 1, 1], [], []>} : vector<8x64xbf16>, vector<64x32xbf16>, vector<8x32xf32> -> vector<8x32xf32>
    %c0_24 = arith.constant 0 : index
    %c0_25 = arith.constant 0 : index
    %37 = vector.load %arg9[%c0_24, %c0_25] : memref<1x32xf32, #tpu.memory_space<vmem>>, vector<1x32xf32>
    %38 = vector.broadcast %37 : vector<1x32xf32> to vector<8x32xf32>
    %39 = arith.addf %36, %38 : vector<8x32xf32>
    %c0_26 = arith.constant 0 : index
    %c0_27 = arith.constant 0 : index
    %40 = vector.load %arg10[%c0_26, %c0_27] : memref<8x32xf32, #tpu.memory_space<vmem>>, vector<8x32xf32>
    tpu.vector_store %arg10[%c0_26, %c0_27], %39 {strides = array<i32>} : memref<8x32xf32, #tpu.memory_space<vmem>>, vector<8x32xf32>,
    return
  }
}

</mosaic_0001>

<llo_original>
// kernel: tpu_custom_call.1
$region0: #{tpu_custom_call.1}
  #allocation0 [shape = 'u32[]', space=smem, size = 0x4, offset = 0x4, fixed_abs, tag = 'smem constant byte address 0x4 - core index']
  #allocation1 [shape = 'u32[72,128]{1,0:T(1,128)}', space=vmem, size = 0x9000, scoped, tag = 'internal scratch']
  %s0 = inlined_call_operand.vmem [shape: f32[8,384], index: 0, kind: input, shape index: {}]
  %s1 = inlined_call_operand.vmem [shape: f32[8,9,32], index: 1, kind: input, shape index: {}]
  %s2 = inlined_call_operand.vmem [shape: s32[8,1], index: 2, kind: input, shape index: {}]
  %s3 = inlined_call_operand.vmem [shape: f32[8,32], index: 3, kind: input, shape index: {}]
  %s4 = inlined_call_operand.vmem [shape: bf16[384,32], index: 4, kind: input, shape index: {}]
  %s5 = inlined_call_operand.vmem [shape: f32[1,32], index: 5, kind: input, shape index: {}]
  %s6 = inlined_call_operand.vmem [shape: bf16[128,64], index: 6, kind: input, shape index: {}]
  %s7 = inlined_call_operand.vmem [shape: f32[1,64], index: 7, kind: input, shape index: {}]
  %s8 = inlined_call_operand.vmem [shape: bf16[64,32], index: 8, kind: input, shape index: {}]
  %s9 = inlined_call_operand.vmem [shape: f32[1,32], index: 9, kind: input, shape index: {}]
  %s10 = inlined_call_operand.hbm [shape: f32[8,32], index: 10, kind: output, shape index: {}]
  %s11 = sld [smem:[#allocation0]]
  $region50: #{tpu_custom_call.1} parent=0
    _
  %s13 = ssub.s32 1, %s11
  %s14 = scalar_select 0, %s13, %s11
  $region1: #{tpu_custom_call.1} parent=0
    #allocation2 [shape = 'u8[4096]{0}', space=vmem, size = 0x1000, scoped, tag = 'output window, operand 0, single buffered']
    #allocation3 [shape = 's32[1]{0}', space=sflag, size = 0x4, scoped, tag = 'scoped memory for tpu_custom_call.1']
    %15 = vsyncpa [#allocation3], 0
    // Predicated region
    $region2: #{tpu_custom_call.1} parent=1 // pred_check
      _
    $region3: #{tpu_custom_call.1} parent=1 // pred_check_branch
      %17 = sbr.rel (0) target = $region5
    $region4: #{tpu_custom_call.1} parent=1 // pred_region
      _
    $region5: #{tpu_custom_call.1} parent=1 // pred_fallthru
      _
    // Predicated region
    $region6: #{tpu_custom_call.1} parent=1 // pred_check
      _
    $region7: #{tpu_custom_call.1} parent=1 // pred_check_branch
      %19 = sbr.rel (0) target = $region9
    $region8: #{tpu_custom_call.1} parent=1 // pred_region
      _
    $region9: #{tpu_custom_call.1} parent=1 // pred_fallthru
      _
    // Predicated region
    $region10: #{tpu_custom_call.1} parent=1 // pred_check
      _
    $region11: #{tpu_custom_call.1} parent=1 // pred_check_branch
      %21 = sbr.rel (0) target = $region13
    $region12: #{tpu_custom_call.1} parent=1 // pred_region
      _
    $region13: #{tpu_custom_call.1} parent=1 // pred_fallthru
      _
    // Predicated region
    $region14: #{tpu_custom_call.1} parent=1 // pred_check
      _
    $region15: #{tpu_custom_call.1} parent=1 // pred_check_branch
      %23 = sbr.rel (0) target = $region17
    $region16: #{tpu_custom_call.1} parent=1 // pred_region
      _
    $region17: #{tpu_custom_call.1} parent=1 // pred_fallthru
      _
    // Predicated region
    $region18: #{tpu_custom_call.1} parent=1 // pred_check
      _
    $region19: #{tpu_custom_call.1} parent=1 // pred_check_branch
      %25 = sbr.rel (0) target = $region21
    $region20: #{tpu_custom_call.1} parent=1 // pred_region
      _
    $region21: #{tpu_custom_call.1} parent=1 // pred_fallthru
      _
    // Predicated region
    $region22: #{tpu_custom_call.1} parent=1 // pred_check
      _
    $region23: #{tpu_custom_call.1} parent=1 // pred_check_branch
      %27 = sbr.rel (0) target = $region25
    $region24: #{tpu_custom_call.1} parent=1 // pred_region
      _
    $region25: #{tpu_custom_call.1} parent=1 // pred_fallthru
      _
    // Predicated region
    $region26: #{tpu_custom_call.1} parent=1 // pred_check
      _
    $region27: #{tpu_custom_call.1} parent=1 // pred_check_branch
      %29 = sbr.rel (0) target = $region29
    $region28: #{tpu_custom_call.1} parent=1 // pred_region
      _
    $region29: #{tpu_custom_call.1} parent=1 // pred_fallthru
      _
    // Predicated region
    $region30: #{tpu_custom_call.1} parent=1 // pred_check
      _
    $region31: #{tpu_custom_call.1} parent=1 // pred_check_branch
      %31 = sbr.rel (0) target = $region33
    $region32: #{tpu_custom_call.1} parent=1 // pred_region
      _
    $region33: #{tpu_custom_call.1} parent=1 // pred_fallthru
      _
    // Predicated region
    $region34: #{tpu_custom_call.1} parent=1 // pred_check
      _
    $region35: #{tpu_custom_call.1} parent=1 // pred_check_branch
      %33 = sbr.rel (0) target = $region37
    $region36: #{tpu_custom_call.1} parent=1 // pred_region
      _
    $region37: #{tpu_custom_call.1} parent=1 // pred_fallthru
      _
    // Predicated region
    $region38: #{tpu_custom_call.1} parent=1 // pred_check
      _
    $region39: #{tpu_custom_call.1} parent=1 // pred_check_branch
      %35 = sbr.rel (0) target = $region41
    $region40: #{tpu_custom_call.1} parent=1 // pred_region
      _
    $region41: #{tpu_custom_call.1} parent=1 // pred_fallthru
      _
    %v37 = vld [vmem:[%s0] sm:$0xff]
    %v38 = vld [vmem:[%s0 + $0x8] sm:$0xff]
    %v39 = vld [vmem:[%s0 + $0x10] sm:$0xff]
    %v40 = vand.u32 2147483647, %v37
    %v41 = vand.u32 2147483647, %v38
    %v42 = vand.u32 2147483647, %v39
    %v43 = vmax.f32 %v40, 1e-12
    %v44 = vmax.f32 %v41, 1e-12
    %v45 = vmax.f32 %v42, 1e-12
    %v46 = vrcp.pop %v43
    %v47 = vmul.f32 %v43, %v46
    %v48 = vsub.f32 1.0, %v47
    %v49 = vmul.f32 %v46, %v48
    %v50 = vadd.f32 %v46, %v49
    %vm51 = vweird.f32 %v43
    %vm52 = vweird.f32 %v46
    %vm53 = vmor %vm51, %vm52
    %v54 = vsel %vm53, %v46, %v50
    %v55 = vand.u32 2147483647, %v43
    %vm56 = vcmp.eq.f32.partialorder %v55, 8.507059e+37
    %v57 = vand.u32 %v43, 2147483648
    %v58 = vor.u32 1.1754944e-38, %v57
    %v59 = vsel %vm56, %v58, %v54
    %v60 = vmul.f32 %v37, %v59
    %v61 = vrcp.pop %v44
    %v62 = vmul.f32 %v44, %v61
    %v63 = vsub.f32 1.0, %v62
    %v64 = vmul.f32 %v61, %v63
    %v65 = vadd.f32 %v61, %v64
    %vm66 = vweird.f32 %v44
    %vm67 = vweird.f32 %v61
    %vm68 = vmor %vm66, %vm67
    %v69 = vsel %vm68, %v61, %v65
    %v70 = vand.u32 2147483647, %v44
    %vm71 = vcmp.eq.f32.partialorder %v70, 8.507059e+37
    %v72 = vand.u32 %v44, 2147483648
    %v73 = vor.u32 1.1754944e-38, %v72
    %v74 = vsel %vm71, %v73, %v69
    %v75 = vmul.f32 %v38, %v74
    %v76 = vrcp.pop %v45
    %v77 = vmul.f32 %v45, %v76
    %v78 = vsub.f32 1.0, %v77
    %v79 = vmul.f32 %v76, %v78
    %v80 = vadd.f32 %v76, %v79
    %vm81 = vweird.f32 %v45
    %vm82 = vweird.f32 %v76
    %vm83 = vmor %vm81, %vm82
    %v84 = vsel %vm83, %v76, %v80
    %v85 = vand.u32 2147483647, %v45
    %vm86 = vcmp.eq.f32.partialorder %v85, 8.507059e+37
    %v87 = vand.u32 %v45, 2147483648
    %v88 = vor.u32 1.1754944e-38, %v87
    %v89 = vsel %vm86, %v88, %v84
    %v90 = vmul.f32 %v39, %v89
    %v91 = vpack.c.bf16 %v60, %v60
    %v92 = vpack.c.bf16 %v75, %v75
    %v93 = vpack.c.bf16 %v90, %v90
    %v94 = vld [vmem:[%s4] sm:$0xf]
    %v95 = vld [vmem:[%s4 + $0x4] sm:$0xf]
    %v96 = vld [vmem:[%s4 + $0x8] sm:$0xf]
    %v97 = vld [vmem:[%s4 + $0xc] sm:$0xf]
    %v98 = vld [vmem:[%s4 + $0x10] sm:$0xf]
    %v99 = vld [vmem:[%s4 + $0x14] sm:$0xf]
    %v100 = vld [vmem:[%s4 + $0x18] sm:$0xf]
    %v101 = vld [vmem:[%s4 + $0x1c] sm:$0xf]
    %v102 = vld [vmem:[%s4 + $0x20] sm:$0xf]
    %v103 = vld [vmem:[%s4 + $0x24] sm:$0xf]
    %v104 = vld [vmem:[%s4 + $0x28] sm:$0xf]
    %v105 = vld [vmem:[%s4 + $0x2c] sm:$0xf]
    %v106 = vld [vmem:[%s4 + $0x30] sm:$0xf]
    %v107 = vld [vmem:[%s4 + $0x34] sm:$0xf]
    %v108 = vld [vmem:[%s4 + $0x38] sm:$0xf]
    %v109 = vld [vmem:[%s4 + $0x3c] sm:$0xf]
    %v110 = vld [vmem:[%s4 + $0x40] sm:$0xf]
    %v111 = vld [vmem:[%s4 + $0x44] sm:$0xf]
    %v112 = vld [vmem:[%s4 + $0x48] sm:$0xf]
    %v113 = vld [vmem:[%s4 + $0x4c] sm:$0xf]
    %v114 = vld [vmem:[%s4 + $0x50] sm:$0xf]
    %v115 = vld [vmem:[%s4 + $0x54] sm:$0xf]
    %v116 = vld [vmem:[%s4 + $0x58] sm:$0xf]
    %v117 = vld [vmem:[%s4 + $0x5c] sm:$0xf]
    %v118 = vld [vmem:[%s4 + $0x60] sm:$0xf]
    %v119 = vld [vmem:[%s4 + $0x64] sm:$0xf]
    %v120 = vld [vmem:[%s4 + $0x68] sm:$0xf]
    %v121 = vld [vmem:[%s4 + $0x6c] sm:$0xf]
    %v122 = vld [vmem:[%s4 + $0x70] sm:$0xf]
    %v123 = vld [vmem:[%s4 + $0x74] sm:$0xf]
    %v124 = vld [vmem:[%s4 + $0x78] sm:$0xf]
    %v125 = vld [vmem:[%s4 + $0x7c] sm:$0xf]
    %v126 = vld [vmem:[%s4 + $0x80] sm:$0xf]
    %v127 = vld [vmem:[%s4 + $0x84] sm:$0xf]
    %v128 = vld [vmem:[%s4 + $0x88] sm:$0xf]
    %v129 = vld [vmem:[%s4 + $0x8c] sm:$0xf]
    %v130 = vld [vmem:[%s4 + $0x90] sm:$0xf]
    %v131 = vld [vmem:[%s4 + $0x94] sm:$0xf]
    %v132 = vld [vmem:[%s4 + $0x98] sm:$0xf]
    %v133 = vld [vmem:[%s4 + $0x9c] sm:$0xf]
    %v134 = vld [vmem:[%s4 + $0xa0] sm:$0xf]
    %v135 = vld [vmem:[%s4 + $0xa4] sm:$0xf]
    %v136 = vld [vmem:[%s4 + $0xa8] sm:$0xf]
    %v137 = vld [vmem:[%s4 + $0xac] sm:$0xf]
    %v138 = vld [vmem:[%s4 + $0xb0] sm:$0xf]
    %v139 = vld [vmem:[%s4 + $0xb4] sm:$0xf]
    %v140 = vld [vmem:[%s4 + $0xb8] sm:$0xf]
    %v141 = vld [vmem:[%s4 + $0xbc] sm:$0xf]
    %v142 = vld [vmem:[%s5] sm:$0x1]
    %v144 = vperm.slane %v142, 0
    %v194 = vunpack.c.l.b16 %v94
    %v195 = vunpack.c.l.b16 %v95
    %v196 = vunpack.c.l.b16 %v96
    %v197 = vunpack.c.l.b16 %v97
    %v198 = vunpack.c.l.b16 %v98
    %v199 = vunpack.c.l.b16 %v99
    %v200 = vunpack.c.l.b16 %v100
    %v201 = vunpack.c.l.b16 %v101
    %v202 = vunpack.c.l.b16 %v102
    %v203 = vunpack.c.l.b16 %v103
    %v204 = vunpack.c.l.b16 %v104
    %v205 = vunpack.c.l.b16 %v105
    %v206 = vunpack.c.l.b16 %v106
    %v207 = vunpack.c.l.b16 %v107
    %v208 = vunpack.c.l.b16 %v108
    %v209 = vunpack.c.l.b16 %v109
    %v210 = vunpack.c.l.b16 %v110
    %v211 = vunpack.c.l.b16 %v111
    %v212 = vunpack.c.l.b16 %v112
    %v213 = vunpack.c.l.b16 %v113
    %v214 = vunpack.c.l.b16 %v114
    %v215 = vunpack.c.l.b16 %v115
    %v216 = vunpack.c.l.b16 %v116
    %v217 = vunpack.c.l.b16 %v117
    %v218 = vunpack.c.l.b16 %v118
    %v219 = vunpack.c.l.b16 %v119
    %v220 = vunpack.c.l.b16 %v120
    %v221 = vunpack.c.l.b16 %v121
    %v222 = vunpack.c.l.b16 %v122
    %v223 = vunpack.c.l.b16 %v123
    %v224 = vunpack.c.l.b16 %v124
    %v225 = vunpack.c.l.b16 %v125
    %v226 = vunpack.c.l.b16 %v126
    %v227 = vunpack.c.l.b16 %v127
    %v228 = vunpack.c.l.b16 %v128
    %v229 = vunpack.c.l.b16 %v129
    %v230 = vunpack.c.l.b16 %v130
    %v231 = vunpack.c.l.b16 %v131
    %v232 = vunpack.c.l.b16 %v132
    %v233 = vunpack.c.l.b16 %v133
    %v234 = vunpack.c.l.b16 %v134
    %v235 = vunpack.c.l.b16 %v135
    %v236 = vunpack.c.l.b16 %v136
    %v237 = vunpack.c.l.b16 %v137
    %v238 = vunpack.c.l.b16 %v138
    %v239 = vunpack.c.l.b16 %v139
    %v240 = vunpack.c.l.b16 %v140
    %v241 = vunpack.c.l.b16 %v141
    %v242 = vpack.c.b16 %v195, %v194
    %v243 = vpack.c.b16 %v197, %v196
    %v244 = vpack.c.b16 %v199, %v198
    %v245 = vpack.c.b16 %v201, %v200
    %v246 = vpack.c.b16 %v203, %v202
    %v247 = vpack.c.b16 %v205, %v204
    %v248 = vpack.c.b16 %v207, %v206
    %v249 = vpack.c.b16 %v209, %v208
    %v250 = vpack.c.b16 %v211, %v210
    %v251 = vpack.c.b16 %v213, %v212
    %v252 = vpack.c.b16 %v215, %v214
    %v253 = vpack.c.b16 %v217, %v216
    %v254 = vpack.c.b16 %v219, %v218
    %v255 = vpack.c.b16 %v221, %v220
    %v256 = vpack.c.b16 %v223, %v222
    %v257 = vpack.c.b16 %v225, %v224
    %v258 = vpack.c.b16 %v227, %v226
    %v259 = vpack.c.b16 %v229, %v228
    %v260 = vpack.c.b16 %v231, %v230
    %v261 = vpack.c.b16 %v233, %v232
    %v262 = vpack.c.b16 %v235, %v234
    %v263 = vpack.c.b16 %v237, %v236
    %v264 = vpack.c.b16 %v239, %v238
    %v265 = vpack.c.b16 %v241, %v240
    %290 = vmatpush.bf16.msra.mxu0 %v249
    %291 = vmatpush.bf16.msra.mxu0 %v248
    %292 = vmatpush.bf16.msra.mxu0 %v247
    %293 = vmatpush.bf16.msra.mxu0 %v246
    %294 = vmatpush.bf16.msra.mxu0 %v245
    %295 = vmatpush.bf16.msra.mxu0 %v244
    %296 = vmatpush.bf16.msra.mxu0 %v243
    %297 = vmatpush.bf16.msra.mxu0 %v242
    %298 = vmatmul.bf16.gmra.mxu0 %v91
    %v299 = vpop.f32.mrf.mxu0
    %v300 = vadd.f32 %v144, %v299
    %v301 = vpop.f32.mrf.mxu0
    %302 = vdwg.mxu0
    %303 = vmatpush.bf16.msra.mxu0 %v257
    %304 = vmatpush.bf16.msra.mxu0 %v256
    %305 = vmatpush.bf16.msra.mxu0 %v255
    %306 = vmatpush.bf16.msra.mxu0 %v254
    %307 = vmatpush.bf16.msra.mxu0 %v253
    %308 = vmatpush.bf16.msra.mxu0 %v252
    %309 = vmatpush.bf16.msra.mxu0 %v251
    %310 = vmatpush.bf16.msra.mxu0 %v250
    %311 = vmatmul.bf16.gmra.mxu0 %v92
    %v312 = vpop.f32.mrf.mxu0
    %v313 = vadd.f32 %v300, %v312
    %v314 = vpop.f32.mrf.mxu0
    %315 = vdwg.mxu0
    %316 = vmatpush.bf16.msra.mxu0 %v265
    %317 = vmatpush.bf16.msra.mxu0 %v264
    %318 = vmatpush.bf16.msra.mxu0 %v263
    %319 = vmatpush.bf16.msra.mxu0 %v262
    %320 = vmatpush.bf16.msra.mxu0 %v261
    %321 = vmatpush.bf16.msra.mxu0 %v260
    %322 = vmatpush.bf16.msra.mxu0 %v259
    %323 = vmatpush.bf16.msra.mxu0 %v258
    %324 = vmatmul.bf16.gmra.mxu0 %v93
    %v325 = vpop.f32.mrf.mxu0
    %v326 = vadd.f32 %v313, %v325
    %v327 = vpop.f32.mrf.mxu0
    %328 = vdwg.mxu0
    %v329 = vld [vmem:[%s1] sm:$0xff]
    %v330 = vld [vmem:[%s1 + $0x8] sm:$0x1]
    %v331 = vld [vmem:[%s1 + $0x10] sm:$0xff]
    %v332 = vld [vmem:[%s1 + $0x18] sm:$0x1]
    %v333 = vld [vmem:[%s1 + $0x20] sm:$0xff]
    %v334 = vld [vmem:[%s1 + $0x28] sm:$0x1]
    %v335 = vld [vmem:[%s1 + $0x30] sm:$0xff]
    %v336 = vld [vmem:[%s1 + $0x38] sm:$0x1]
    %v337 = vld [vmem:[%s1 + $0x40] sm:$0xff]
    %v338 = vld [vmem:[%s1 + $0x48] sm:$0x1]
    %v339 = vld [vmem:[%s1 + $0x50] sm:$0xff]
    %v340 = vld [vmem:[%s1 + $0x58] sm:$0x1]
    %v341 = vld [vmem:[%s1 + $0x60] sm:$0xff]
    %v342 = vld [vmem:[%s1 + $0x68] sm:$0x1]
    %v343 = vld [vmem:[%s1 + $0x70] sm:$0xff]
    %v344 = vld [vmem:[%s1 + $0x78] sm:$0x1]
    %vm345 = vcmask 261120
    %v346 = vsel %vm345, %v329, 0.0
    %vm347 = vcmask 253952
    %v348 = vsel %vm347, %v330, 0.0
    %v349 = vadd.f32 %v346, %v348
    %v350 = vrot.slane %v349, 4
    %v351 = vadd.f32 %v349, %v350
    %v352 = vrot.slane %v351, 2
    %v353 = vadd.f32 %v351, %v352
    %v354 = vrot.slane %v353, 1
    %v355 = vadd.f32 %v353, %v354
    %v356 = vsel %vm345, %v331, 0.0
    %v357 = vsel %vm347, %v332, 0.0
    %v358 = vadd.f32 %v356, %v357
    %v359 = vrot.slane %v358, 4
    %v360 = vadd.f32 %v358, %v359
    %v361 = vrot.slane %v360, 2
    %v362 = vadd.f32 %v360, %v361
    %v363 = vrot.slane %v362, 1
    %v364 = vadd.f32 %v362, %v363
    %v365 = vsel %vm345, %v333, 0.0
    %v366 = vsel %vm347, %v334, 0.0
    %v367 = vadd.f32 %v365, %v366
    %v368 = vrot.slane %v367, 4
    %v369 = vadd.f32 %v367, %v368
    %v370 = vrot.slane %v369, 2
    %v371 = vadd.f32 %v369, %v370
    %v372 = vrot.slane %v371, 1
    %v373 = vadd.f32 %v371, %v372
    %v374 = vsel %vm345, %v335, 0.0
    %v375 = vsel %vm347, %v336, 0.0
    %v376 = vadd.f32 %v374, %v375
    %v377 = vrot.slane %v376, 4
    %v378 = vadd.f32 %v376, %v377
    %v379 = vrot.slane %v378, 2
    %v380 = vadd.f32 %v378, %v379
    %v381 = vrot.slane %v380, 1
    %v382 = vadd.f32 %v380, %v381
    %v383 = vsel %vm345, %v337, 0.0
    %v384 = vsel %vm347, %v338, 0.0
    %v385 = vadd.f32 %v383, %v384
    %v386 = vrot.slane %v385, 4
    %v387 = vadd.f32 %v385, %v386
    %v388 = vrot.slane %v387, 2
    %v389 = vadd.f32 %v387, %v388
    %v390 = vrot.slane %v389, 1
    %v391 = vadd.f32 %v389, %v390
    %v392 = vsel %vm345, %v339, 0.0
    %v393 = vsel %vm347, %v340, 0.0
    %v394 = vadd.f32 %v392, %v393
    %v395 = vrot.slane %v394, 4
    %v396 = vadd.f32 %v394, %v395
    %v397 = vrot.slane %v396, 2
    %v398 = vadd.f32 %v396, %v397
    %v399 = vrot.slane %v398, 1
    %v400 = vadd.f32 %v398, %v399
    %v401 = vsel %vm345, %v341, 0.0
    %v402 = vsel %vm347, %v342, 0.0
    %v403 = vadd.f32 %v401, %v402
    %v404 = vrot.slane %v403, 4
    %v405 = vadd.f32 %v403, %v404
    %v406 = vrot.slane %v405, 2
    %v407 = vadd.f32 %v405, %v406
    %v408 = vrot.slane %v407, 1
    %v409 = vadd.f32 %v407, %v408
    %v410 = vsel %vm345, %v343, 0.0
    %v411 = vsel %vm347, %v344, 0.0
    %v412 = vadd.f32 %v410, %v411
    %v413 = vrot.slane %v412, 4
    %v414 = vadd.f32 %v412, %v413
    %v415 = vrot.slane %v414, 2
    %v416 = vadd.f32 %v414, %v415
    %v417 = vrot.slane %v416, 1
    %v418 = vadd.f32 %v416, %v417
    %v419 = vrcp.pop 9.0
    %v420 = vmul.f32 9.0, %v419
    %v421 = vsub.f32 1.0, %v420
    %v422 = vmul.f32 %v419, %v421
    %v423 = vadd.f32 %v419, %v422
    %vm424 = vweird.f32 %v419
    %v425 = vsel %vm424, %v419, %v423
    %v426 = vmul.f32 %v355, %v425
    %v427 = vmul.f32 %v364, %v425
    %v428 = vmul.f32 %v373, %v425
    %v429 = vmul.f32 %v382, %v425
    %v430 = vmul.f32 %v391, %v425
    %v431 = vmul.f32 %v400, %v425
    %v432 = vmul.f32 %v409, %v425
    %v433 = vmul.f32 %v418, %v425
    %v434 = vlaneseq
    %v435 = vand.u32 %v434, 127
    %v436 = vld [vmem:[%s2] sm:$0xff]
    %437 = vset.pattern.permute.xlu0 0
    %438 = vperm.xlu0 %437, %v436
    %v439 = vpop.permute.xlu0 %438
    %vm440 = vcmp.eq.s32.totalorder %v435, %v439
    %v441 = vsel %vm440, 1, 0
    %v442 = vcvt.s32.f32 %v441
    %v443 = vperm.slane %v442, 0
    %v444 = vlaneseq
    %v445 = vshrl.u32 %v444, 7
    %447 = vset.pattern.permute.xlu0 %v445
    %448 = vperm.xlu0 %447, %v443
    %v449 = vpop.permute.xlu0 %448
    %v450 = vlaneseq
    %v451 = vshrl.u32 %v450, 7
    %v452 = vadd.s32 %v451, 8
    %453 = vset.pattern.permute.xlu0 %v452
    %454 = vperm.xlu0 %453, %v443
    %v455 = vpop.permute.xlu0 %454
    %v456 = vperm.slane %v442, 1
    %v457 = vlaneseq
    %v458 = vshrl.u32 %v457, 7
    %460 = vset.pattern.permute.xlu0 %v458
    %461 = vperm.xlu0 %460, %v456
    %v462 = vpop.permute.xlu0 %461
    %v463 = vlaneseq
    %v464 = vshrl.u32 %v463, 7
    %v465 = vadd.s32 %v464, 8
    %466 = vset.pattern.permute.xlu0 %v465
    %467 = vperm.xlu0 %466, %v456
    %v468 = vpop.permute.xlu0 %467
    %v469 = vperm.slane %v442, 2
    %v470 = vlaneseq
    %v471 = vshrl.u32 %v470, 7
    %473 = vset.pattern.permute.xlu0 %v471
    %474 = vperm.xlu0 %473, %v469
    %v475 = vpop.permute.xlu0 %474
    %v476 = vlaneseq
    %v477 = vshrl.u32 %v476, 7
    %v478 = vadd.s32 %v477, 8
    %479 = vset.pattern.permute.xlu0 %v478
    %480 = vperm.xlu0 %479, %v469
    %v481 = vpop.permute.xlu0 %480
    %v482 = vperm.slane %v442, 3
    %v483 = vlaneseq
    %v484 = vshrl.u32 %v483, 7
    %486 = vset.pattern.permute.xlu0 %v484
    %487 = vperm.xlu0 %486, %v482
    %v488 = vpop.permute.xlu0 %487
    %v489 = vlaneseq
    %v490 = vshrl.u32 %v489, 7
    %v491 = vadd.s32 %v490, 8
    %492 = vset.pattern.permute.xlu0 %v491
    %493 = vperm.xlu0 %492, %v482
    %v494 = vpop.permute.xlu0 %493
    %v495 = vperm.slane %v442, 4
    %v496 = vlaneseq
    %v497 = vshrl.u32 %v496, 7
    %499 = vset.pattern.permute.xlu0 %v497
    %500 = vperm.xlu0 %499, %v495
    %v501 = vpop.permute.xlu0 %500
    %v502 = vlaneseq
    %v503 = vshrl.u32 %v502, 7
    %v504 = vadd.s32 %v503, 8
    %505 = vset.pattern.permute.xlu0 %v504
    %506 = vperm.xlu0 %505, %v495
    %v507 = vpop.permute.xlu0 %506
    %v508 = vperm.slane %v442, 5
    %v509 = vlaneseq
    %v510 = vshrl.u32 %v509, 7
    %512 = vset.pattern.permute.xlu0 %v510
    %513 = vperm.xlu0 %512, %v508
    %v514 = vpop.permute.xlu0 %513
    %v515 = vlaneseq
    %v516 = vshrl.u32 %v515, 7
    %v517 = vadd.s32 %v516, 8
    %518 = vset.pattern.permute.xlu0 %v517
    %519 = vperm.xlu0 %518, %v508
    %v520 = vpop.permute.xlu0 %519
    %v521 = vperm.slane %v442, 6
    %v522 = vlaneseq
    %v523 = vshrl.u32 %v522, 7
    %525 = vset.pattern.permute.xlu0 %v523
    %526 = vperm.xlu0 %525, %v521
    %v527 = vpop.permute.xlu0 %526
    %v528 = vlaneseq
    %v529 = vshrl.u32 %v528, 7
    %v530 = vadd.s32 %v529, 8
    %531 = vset.pattern.permute.xlu0 %v530
    %532 = vperm.xlu0 %531, %v521
    %v533 = vpop.permute.xlu0 %532
    %v534 = vperm.slane %v442, 7
    %v535 = vlaneseq
    %v536 = vshrl.u32 %v535, 7
    %538 = vset.pattern.permute.xlu0 %v536
    %539 = vperm.xlu0 %538, %v534
    %v540 = vpop.permute.xlu0 %539
    %v541 = vlaneseq
    %v542 = vshrl.u32 %v541, 7
    %v543 = vadd.s32 %v542, 8
    %544 = vset.pattern.permute.xlu0 %v543
    %545 = vperm.xlu0 %544, %v534
    %v546 = vpop.permute.xlu0 %545
    %v547 = vmul.f32 %v329, %v449
    %v548 = vmul.f32 %v330, %v455
    %v549 = vmul.f32 %v331, %v462
    %v550 = vmul.f32 %v332, %v468
    %v551 = vmul.f32 %v333, %v475
    %v552 = vmul.f32 %v334, %v481
    %v553 = vmul.f32 %v335, %v488
    %v554 = vmul.f32 %v336, %v494
    %v555 = vmul.f32 %v337, %v501
    %v556 = vmul.f32 %v338, %v507
    %v557 = vmul.f32 %v339, %v514
    %v558 = vmul.f32 %v340, %v520
    %v559 = vmul.f32 %v341, %v527
    %v560 = vmul.f32 %v342, %v533
    %v561 = vmul.f32 %v343, %v540
    %v562 = vmul.f32 %v344, %v546
    %v563 = vsel %vm345, %v547, 0.0
    %v564 = vsel %vm347, %v548, 0.0
    %v565 = vadd.f32 %v563, %v564
    %v566 = vrot.slane %v565, 4
    %v567 = vadd.f32 %v565, %v566
    %v568 = vrot.slane %v567, 2
    %v569 = vadd.f32 %v567, %v568
    %v570 = vrot.slane %v569, 1
    %v571 = vadd.f32 %v569, %v570
    %v572 = vsel %vm345, %v549, 0.0
    %v573 = vsel %vm347, %v550, 0.0
    %v574 = vadd.f32 %v572, %v573
    %v575 = vrot.slane %v574, 4
    %v576 = vadd.f32 %v574, %v575
    %v577 = vrot.slane %v576, 2
    %v578 = vadd.f32 %v576, %v577
    %v579 = vrot.slane %v578, 1
    %v580 = vadd.f32 %v578, %v579
    %v581 = vsel %vm345, %v551, 0.0
    %v582 = vsel %vm347, %v552, 0.0
    %v583 = vadd.f32 %v581, %v582
    %v584 = vrot.slane %v583, 4
    %v585 = vadd.f32 %v583, %v584
    %v586 = vrot.slane %v585, 2
    %v587 = vadd.f32 %v585, %v586
    %v588 = vrot.slane %v587, 1
    %v589 = vadd.f32 %v587, %v588
    %v590 = vsel %vm345, %v553, 0.0
    %v591 = vsel %vm347, %v554, 0.0
    %v592 = vadd.f32 %v590, %v591
    %v593 = vrot.slane %v592, 4
    %v594 = vadd.f32 %v592, %v593
    %v595 = vrot.slane %v594, 2
    %v596 = vadd.f32 %v594, %v595
    %v597 = vrot.slane %v596, 1
    %v598 = vadd.f32 %v596, %v597
    %v599 = vsel %vm345, %v555, 0.0
    %v600 = vsel %vm347, %v556, 0.0
    %v601 = vadd.f32 %v599, %v600
    %v602 = vrot.slane %v601, 4
    %v603 = vadd.f32 %v601, %v602
    %v604 = vrot.slane %v603, 2
    %v605 = vadd.f32 %v603, %v604
    %v606 = vrot.slane %v605, 1
    %v607 = vadd.f32 %v605, %v606
    %v608 = vsel %vm345, %v557, 0.0
    %v609 = vsel %vm347, %v558, 0.0
    %v610 = vadd.f32 %v608, %v609
    %v611 = vrot.slane %v610, 4
    %v612 = vadd.f32 %v610, %v611
    %v613 = vrot.slane %v612, 2
    %v614 = vadd.f32 %v612, %v613
    %v615 = vrot.slane %v614, 1
    %v616 = vadd.f32 %v614, %v615
    %v617 = vsel %vm345, %v559, 0.0
    %v618 = vsel %vm347, %v560, 0.0
    %v619 = vadd.f32 %v617, %v618
    %v620 = vrot.slane %v619, 4
    %v621 = vadd.f32 %v619, %v620
    %v622 = vrot.slane %v621, 2
    %v623 = vadd.f32 %v621, %v622
    %v624 = vrot.slane %v623, 1
    %v625 = vadd.f32 %v623, %v624
    %v626 = vsel %vm345, %v561, 0.0
    %v627 = vsel %vm347, %v562, 0.0
    %v628 = vadd.f32 %v626, %v627
    %v629 = vrot.slane %v628, 4
    %v630 = vadd.f32 %v628, %v629
    %v631 = vrot.slane %v630, 2
    %v632 = vadd.f32 %v630, %v631
    %v633 = vrot.slane %v632, 1
    %v634 = vadd.f32 %v632, %v633
    %v635 = vld [vmem:[%s3] sm:$0xff]
    %vm644 = vcmask 1041409
    %v645 = vsel %vm644, %v427, %v426
    %vm646 = vcmask 1042434
    %v647 = vsel %vm646, %v428, %v645
    %vm648 = vcmask 1043459
    %v649 = vsel %vm648, %v429, %v647
    %vm650 = vcmask 1044484
    %v651 = vsel %vm650, %v430, %v649
    %vm652 = vcmask 1045509
    %v653 = vsel %vm652, %v431, %v651
    %vm654 = vcmask 1046534
    %v655 = vsel %vm654, %v432, %v653
    %vm656 = vcmask 1047559
    %v657 = vsel %vm656, %v433, %v655
    %658 = vrot.lane.b32.xlu0 %v657, 32
    %v659 = vpop.permute.xlu0 %658
    %v669 = vsel %vm644, %v580, %v571
    %v670 = vsel %vm646, %v589, %v669
    %v671 = vsel %vm648, %v598, %v670
    %v672 = vsel %vm650, %v607, %v671
    %v673 = vsel %vm652, %v616, %v672
    %v674 = vsel %vm654, %v625, %v673
    %v675 = vsel %vm656, %v634, %v674
    %676 = vrot.lane.b32.xlu0 %v675, 64
    %v677 = vpop.permute.xlu0 %676
    %680 = vrot.lane.b32.xlu0 %v635, 96
    %v681 = vpop.permute.xlu0 %680
    %v683 = vsel %vm345, %v326, %v659
    %vm684 = vcmask 523264
    %v685 = vsel %vm684, %v683, %v677
    %vm686 = vcmask 785408
    %v687 = vsel %vm686, %v685, %v681
    %v688 = vpack.c.bf16 %v687, %v687
    %v689 = vld [vmem:[%s6] sm:$0xf]
    %v690 = vld [vmem:[%s6 + $0x4] sm:$0xf]
    %v691 = vld [vmem:[%s6 + $0x8] sm:$0xf]
    %v692 = vld [vmem:[%s6 + $0xc] sm:$0xf]
    %v693 = vld [vmem:[%s6 + $0x10] sm:$0xf]
    %v694 = vld [vmem:[%s6 + $0x14] sm:$0xf]
    %v695 = vld [vmem:[%s6 + $0x18] sm:$0xf]
    %v696 = vld [vmem:[%s6 + $0x1c] sm:$0xf]
    %v697 = vld [vmem:[%s6 + $0x20] sm:$0xf]
    %v698 = vld [vmem:[%s6 + $0x24] sm:$0xf]
    %v699 = vld [vmem:[%s6 + $0x28] sm:$0xf]
    %v700 = vld [vmem:[%s6 + $0x2c] sm:$0xf]
    %v701 = vld [vmem:[%s6 + $0x30] sm:$0xf]
    %v702 = vld [vmem:[%s6 + $0x34] sm:$0xf]
    %v703 = vld [vmem:[%s6 + $0x38] sm:$0xf]
    %v704 = vld [vmem:[%s6 + $0x3c] sm:$0xf]
    %v705 = vld [vmem:[%s7] sm:$0x1]
    %v707 = vperm.slane %v705, 0
    %v725 = vunpack.c.l.b16 %v689
    %v726 = vunpack.c.l.b16 %v690
    %v727 = vunpack.c.l.b16 %v691
    %v728 = vunpack.c.l.b16 %v692
    %v729 = vunpack.c.l.b16 %v693
    %v730 = vunpack.c.l.b16 %v694
    %v731 = vunpack.c.l.b16 %v695
    %v732 = vunpack.c.l.b16 %v696
    %v733 = vunpack.c.l.b16 %v697
    %v734 = vunpack.c.l.b16 %v698
    %v735 = vunpack.c.l.b16 %v699
    %v736 = vunpack.c.l.b16 %v700
    %v737 = vunpack.c.l.b16 %v701
    %v738 = vunpack.c.l.b16 %v702
    %v739 = vunpack.c.l.b16 %v703
    %v740 = vunpack.c.l.b16 %v704
    %v741 = vpack.c.b16 %v726, %v725
    %v742 = vpack.c.b16 %v728, %v727
    %v743 = vpack.c.b16 %v730, %v729
    %v744 = vpack.c.b16 %v732, %v731
    %v745 = vpack.c.b16 %v734, %v733
    %v746 = vpack.c.b16 %v736, %v735
    %v747 = vpack.c.b16 %v738, %v737
    %v748 = vpack.c.b16 %v740, %v739
    %757 = vmatpush.bf16.msra.mxu0 %v748
    %758 = vmatpush.bf16.msra.mxu0 %v747
    %759 = vmatpush.bf16.msra.mxu0 %v746
    %760 = vmatpush.bf16.msra.mxu0 %v745
    %761 = vmatpush.bf16.msra.mxu0 %v744
    %762 = vmatpush.bf16.msra.mxu0 %v743
    %763 = vmatpush.bf16.msra.mxu0 %v742
    %764 = vmatpush.bf16.msra.mxu0 %v741
    %765 = vmatmul.bf16.gmra.mxu0 %v688
    %v766 = vpop.f32.mrf.mxu0
    %v767 = vadd.f32 %v707, %v766
    %v768 = vpop.f32.mrf.mxu0
    %769 = vdwg.mxu0
    %v770 = vtanh.pop %v767
    %v771 = vpack.c.bf16 %v770, %v770
    %v772 = vld [vmem:[%s8] sm:$0xf]
    %v773 = vld [vmem:[%s8 + $0x4] sm:$0xf]
    %v774 = vld [vmem:[%s8 + $0x8] sm:$0xf]
    %v775 = vld [vmem:[%s8 + $0xc] sm:$0xf]
    %v776 = vld [vmem:[%s8 + $0x10] sm:$0xf]
    %v777 = vld [vmem:[%s8 + $0x14] sm:$0xf]
    %v778 = vld [vmem:[%s8 + $0x18] sm:$0xf]
    %v779 = vld [vmem:[%s8 + $0x1c] sm:$0xf]
    %v780 = vld [vmem:[%s9] sm:$0x1]
    %v782 = vperm.slane %v780, 0
    %v792 = vunpack.c.l.b16 %v772
    %v793 = vunpack.c.l.b16 %v773
    %v794 = vunpack.c.l.b16 %v774
    %v795 = vunpack.c.l.b16 %v775
    %v796 = vunpack.c.l.b16 %v776
    %v797 = vunpack.c.l.b16 %v777
    %v798 = vunpack.c.l.b16 %v778
    %v799 = vunpack.c.l.b16 %v779
    %v800 = vpack.c.b16 %v793, %v792
    %v801 = vpack.c.b16 %v795, %v794
    %v802 = vpack.c.b16 %v797, %v796
    %v803 = vpack.c.b16 %v799, %v798
    %v809 = vsel %vm684, %v771, 0
    %811 = vmatpush.bf16.msra.mxu0 0
    %812 = vmatpush.bf16.msra.mxu0 0
    %813 = vmatpush.bf16.msra.mxu0 0
    %814 = vmatpush.bf16.msra.mxu0 0
    %815 = vmatpush.bf16.msra.mxu0 %v803
    %816 = vmatpush.bf16.msra.mxu0 %v802
    %817 = vmatpush.bf16.msra.mxu0 %v801
    %818 = vmatpush.bf16.msra.mxu0 %v800
    %819 = vmatmul.bf16.gmra.mxu0 %v809
    %v820 = vpop.f32.mrf.mxu0
    %v821 = vadd.f32 %v782, %v820
    %v822 = vpop.f32.mrf.mxu0
    %823 = vdwg.mxu0
    %824 = vst.msk [vmem:[#allocation2] sm:$0xff] %vm345, %v821
    // Predicated region
    $region42: #{tpu_custom_call.1} parent=1 // pred_check
      _
    $region43: #{tpu_custom_call.1} parent=1 // pred_check_branch
      %826 = sbr.rel (0) target = $region45
    $region44: #{tpu_custom_call.1} parent=1 // pred_region
      %828 = vsyncadd [#allocation3], 0
      %s830 = sshll.u32 [#allocation2], 4
      %s831 = int_to_ptr.vmem [resolvable:$true] %s830
      %s832 = sshll.u32 %s10, 4
      %s833 = int_to_ptr.hbm [resolvable:$true] %s832
      %835 = dma.vmem_to_hbm [thread:$0]  %s831, 128, %s833, [#allocation3]
    $region45: #{tpu_custom_call.1} parent=1 // pred_fallthru
      _
    // Predicated region
    $region46: #{tpu_custom_call.1} parent=1 // pred_check
      _
    $region47: #{tpu_custom_call.1} parent=1 // pred_check_branch
      %837 = sbr.rel (0) target = $region49
    $region48: #{tpu_custom_call.1} parent=1 // pred_region
      %839 = dma.done [#allocation3], 128
    $region49: #{tpu_custom_call.1} parent=1 // pred_fallthru
      _
    %840 = vsyncpa [#allocation3], 1

</llo_original>
